<compile_context>
chip_gen: v7x
topology: tpu7x:2x2x1
jax: 0.10.0
libtpu: 0.0.40
codegen_flags: <defaults>
</compile_context>

<pallas_src>
import functools
import math

import jax
import jax.numpy as jnp
import numpy as np
from jax.experimental import pallas as pl
from jax.experimental.pallas import tpu as pltpu

NEG_INF = -1e9
LN_EPS = 1e-5                       # PyTorch nn.LayerNorm default


def _vmem_limit_bytes():
    """Hardware-derived VMEM limit (falls back to a safe constant)."""
    try:
        cap = int(pltpu.get_tpu_info().vmem_capacity_bytes)
        if cap > 0:
            return min(cap * 3 // 4, 96 * 1024 * 1024)
    except Exception:
        pass
    return 48 * 1024 * 1024


VMEM_LIMIT_BYTES = _vmem_limit_bytes()


# ----------------------------- shared math ----------------------------------

def _layernorm(x, gamma, beta):
    """LayerNorm over the last axis, f32 statistics."""
    mu = jnp.mean(x, axis=-1, keepdims=True)
    var = jnp.mean(jnp.square(x - mu), axis=-1, keepdims=True)
    return (x - mu) * jax.lax.rsqrt(var + LN_EPS) * gamma + beta


def _user_mask(attn_mask, T, S):
    """Additive user mask broadcast to (T, S), stored bf16 (causal NOT folded in)."""
    # TODO(synk): if ce/ae length != T and attn_mask is (T, T) this broadcast fails;
    # the PyTorch source does not show how attn_mask is applied to cross-attention.
    return jnp.broadcast_to(attn_mask, (T, S)).astype(jnp.bfloat16)


def _pick_tile(n, cap, align):
    if n <= cap:
        return n
    t = (cap // align) * align
    while t >= align:
        if n % t == 0:
            return t
        t -= align
    return n  # fall back to the whole axis (block == full dim is always legal)


# ----------------------------- K/V projection kernel -------------------------

def _kv_project_kernel(kv_ref, wk_ref, bk_ref, wv_ref, bv_ref, k_out, v_out,
                       *, num_heads):
    """k_out/v_out[b, h, s, :] = head h of (kv @ Wk + bk) / (kv @ Wv + bv), bf16."""
    x = kv_ref[0]                                  # (ts, D) bf16
    ts, D = x.shape
    dh = D // num_heads
    f32 = jnp.float32
    k = jnp.dot(x, wk_ref[...], preferred_element_type=f32) + bk_ref[...]
    v = jnp.dot(x, wv_ref[...], preferred_element_type=f32) + bv_ref[...]
    # Head split happens ONCE per kv token here (hoisted out of the flash kv loop).
    for h in range(num_heads):
        k_out[0, h] = k[:, h * dh:(h + 1) * dh].astype(k_out.dtype)
        v_out[0, h] = v[:, h * dh:(h + 1) * dh].astype(v_out.dtype)


def project_kv_heads(kv, p, *, num_heads, ts_max=256):
    """Pre-project K/V once: (B, S, D) -> two (B, H, S, dh) bf16 arrays."""
    B, S, D = kv.shape
    assert D % num_heads == 0
    dh = D // num_heads
    ts = _pick_tile(S, ts_max, 16)
    kern = functools.partial(_kv_project_kernel, num_heads=num_heads)

    def _const(shape):
        nd = len(shape)
        return pl.BlockSpec(shape, lambda b, si, _n=nd: (0,) * _n)

    out_sd = jax.ShapeDtypeStruct((B, num_heads, S, dh), jnp.bfloat16)
    return pl.pallas_call(
        kern,
        out_shape=(out_sd, out_sd),
        grid=(B, S // ts),
        in_specs=[
            pl.BlockSpec((1, ts, D), lambda b, si: (b, si, 0)),
            _const((D, D)), _const((1, D)),    # wk, bk
            _const((D, D)), _const((1, D)),    # wv, bv
        ],
        out_specs=(
            pl.BlockSpec((1, num_heads, ts, dh), lambda b, si: (b, 0, si, 0)),
            pl.BlockSpec((1, num_heads, ts, dh), lambda b, si: (b, 0, si, 0)),
        ),
        compiler_params=pltpu.CompilerParams(
            dimension_semantics=("parallel", "parallel"),
            vmem_limit_bytes=VMEM_LIMIT_BYTES),
    )(kv, p["wk"], p["bk"], p["wv"], p["bv"])


# ----------------------------- flash attention kernel ------------------------

def _flash_attn_kernel(*refs, num_heads, causal, fuse_ffn):
    """out = LayerNorm(MHA(x, K, V) + x)  [optionally followed by the FFN].

    Grid = (batch, q-tiles, kv-tiles); kv-tiles is the online-softmax reduction axis.
    K/V arrive already projected and head-split: blocks of shape (1, H, tk, dh).
    """
    if fuse_ffn:
        (x_ref, k_ref, v_ref, mask_ref,
         wq_ref, bq_ref, wo_ref, bo_ref, gamma_ref, beta_ref,
         w1_ref, b1_ref, w2_ref, b2_ref,
         out_ref, q_scr, m_scr, l_scr, acc_scr) = refs
    else:
        (x_ref, k_ref, v_ref, mask_ref,
         wq_ref, bq_ref, wo_ref, bo_ref, gamma_ref, beta_ref,
         out_ref, q_scr, m_scr, l_scr, acc_scr) = refs
        w1_ref = b1_ref = w2_ref = b2_ref = None

    qi = pl.program_id(1)
    ki = pl.program_id(2)
    nk = pl.num_programs(2)

    x_bf = x_ref[0]                     # (tq, D) bf16
    tq, D = x_bf.shape
    H = num_heads
    dh = D // H
    tk = k_ref.shape[2]
    scale = 1.0 / math.sqrt(dh)
    f32, bf16 = jnp.float32, jnp.bfloat16

    @pl.when(ki == 0)
    def _init():
        # Q projection once per (b, q-tile); 1/sqrt(dh) folded into Q here so the
        # (H, tq, tk) score tensor is never rescaled inside the kv loop.
        q = (jnp.dot(x_bf, wq_ref[...], preferred_element_type=f32)
             + bq_ref[...]) * scale
        for h in range(H):              # once per q-tile, NOT per kv step
            q_scr[h] = q[:, h * dh:(h + 1) * dh].astype(bf16)
        m_scr[...] = jnp.full_like(m_scr, -jnp.inf)
        l_scr[...] = jnp.zeros_like(l_scr)
        acc_scr[...] = jnp.zeros_like(acc_scr)

    def _update():
        kh = k_ref[0]                   # (H, tk, dh) bf16, pre-projected
        vh = v_ref[0]
        s = jnp.einsum("htd,hsd->hts", q_scr[...], kh,
                       preferred_element_type=f32)
        s = s + mask_ref[...].astype(f32)[None]        # additive user mask
        if causal:                       # causal term generated in-kernel (no DMA)
            rows = qi * tq + jax.lax.broadcasted_iota(jnp.int32, (tq, tk), 0)
            cols = ki * tk + jax.lax.broadcasted_iota(jnp.int32, (tq, tk), 1)
            s = jnp.where((cols > rows)[None], NEG_INF, s)

        m_prev = m_scr[...]             # (H, tq, 1)
        m_new = jnp.maximum(m_prev, jnp.max(s, axis=-1, keepdims=True))
        alpha = jnp.exp(m_prev - m_new)
        p = jnp.exp(s - m_new)          # unnormalized probs, f32
        l_scr[...] = alpha * l_scr[...] + jnp.sum(p, axis=-1, keepdims=True)
        acc_scr[...] = alpha * acc_scr[...] + jnp.einsum(
            "hts,hsd->htd", p.astype(bf16), vh, preferred_element_type=f32)
        m_scr[...] = m_new

    if causal:
        # Skip compute for kv tiles lying entirely above the diagonal.
        q_end = (qi + 1) * tq - 1
        kv_start = ki * tk

        @pl.when(kv_start <= q_end)
        def _():
            _update()
    else:
        _update()

    @pl.when(ki == nk - 1)
    def _finalize():
        inv_l = pl.reciprocal(l_scr[...], approx=True)          # EUP slot
        ctx = (acc_scr[...] * inv_l).astype(bf16)               # (H, tq, dh)
        # Head-batched output projection + sum over heads (no per-head concat).
        part = jnp.einsum("htd,hdk->htk", ctx, wo_ref[...],
                          preferred_element_type=f32)           # (H, tq, D)
        attn = jnp.sum(part, axis=0) + bo_ref[...]              # (tq, D)
        y = attn + x_bf.astype(f32)                             # residual in f32
        x_out = _layernorm(y, gamma_ref[...], beta_ref[...])
        if fuse_ffn:
            h1 = jnp.dot(x_out.astype(bf16), w1_ref[...],
                         preferred_element_type=f32) + b1_ref[...]
            h1 = jnp.maximum(h1, 0.0)
            x_out = jnp.dot(h1.astype(bf16), w2_ref[...],
                            preferred_element_type=f32) + b2_ref[...]
        out_ref[0] = x_out.astype(out_ref.dtype)


# ----------------------------- wrappers --------------------------------------

def mha_block(q_in, k_heads, v_heads, mask, p, *, num_heads, causal,
              ffn_p=None, out_dtype=jnp.bfloat16, tq_max=256, tk_max=256):
    """LayerNorm(MHA(q_in, K, V) + q_in), optionally followed by the fused FFN."""
    B, T, D = q_in.shape
    S = k_heads.shape[2]
    assert D % num_heads == 0
    dh = D // num_heads
    tq = _pick_tile(T, tq_max, 16)    # bf16 activations: 2nd-minor multiple of 16
    tk = _pick_tile(S, tk_max, 128)   # minor dim of the mask block: multiple of 128
    fuse_ffn = ffn_p is not None
    wo_heads = p["wo"].reshape(num_heads, dh, D)   # head-split output projection

    kern = functools.partial(_flash_attn_kernel, num_heads=num_heads,
                             causal=causal, fuse_ffn=fuse_ffn)

    def _const(shape):
        nd = len(shape)
        # TODO(synk): add pipeline_mode=pl.Buffered(1) to single-buffer these
        # constant-index weight blocks once verified on the target jax build.
        return pl.BlockSpec(shape, lambda b, qi, ki, _n=nd: (0,) * _n)

    in_specs = [
        pl.BlockSpec((1, tq, D), lambda b, qi, ki: (b, qi, 0)),                 # q input
        pl.BlockSpec((1, num_heads, tk, dh), lambda b, qi, ki: (b, 0, ki, 0)),  # K heads
        pl.BlockSpec((1, num_heads, tk, dh), lambda b, qi, ki: (b, 0, ki, 0)),  # V heads
        pl.BlockSpec((tq, tk), lambda b, qi, ki: (qi, ki)),                     # bf16 mask
        _const((D, D)), _const((1, D)),              # wq, bq
        _const((num_heads, dh, D)), _const((1, D)),  # wo (head-split), bo
        _const((1, D)), _const((1, D)),              # gamma, beta
    ]
    args = [q_in, k_heads, v_heads, mask,
            p["wq"], p["bq"], wo_heads, p["bo"], p["gamma"], p["beta"]]
    if fuse_ffn:
        F = ffn_p["w1"].shape[1]
        in_specs += [_const((D, F)), _const((1, F)),
                     _const((F, D)), _const((1, D))]
        args += [ffn_p["w1"], ffn_p["b1"], ffn_p["w2"], ffn_p["b2"]]

    scratch = [
        pltpu.VMEM((num_heads, tq, dh), jnp.bfloat16),  # cached scaled Q heads (bf16)
        pltpu.VMEM((num_heads, tq, 1), jnp.float32),    # online-softmax max
        pltpu.VMEM((num_heads, tq, 1), jnp.float32),    # online-softmax denom
        pltpu.VMEM((num_heads, tq, dh), jnp.float32),   # output accumulator
    ]

    return pl.pallas_call(
        kern,
        out_shape=jax.ShapeDtypeStruct((B, T, D), out_dtype),
        grid=(B, T // tq, S // tk),
        in_specs=in_specs,
        out_specs=pl.BlockSpec((1, tq, D), lambda b, qi, ki: (b, qi, 0)),
        scratch_shapes=scratch,
        compiler_params=pltpu.CompilerParams(
            dimension_semantics=("parallel", "parallel", "arbitrary"),
            vmem_limit_bytes=VMEM_LIMIT_BYTES),
    )(*args)


def decoder_layer_b(params, shifted_right_outputs, ce_outputs, ae_outputs,
                    attn_mask, *, heads):
    """Forward pass of DecoderLayerB (dropout = identity at eval)."""
    bf16 = jnp.bfloat16
    sro = shifted_right_outputs.astype(bf16)
    ce = ce_outputs.astype(bf16)
    ae = ae_outputs.astype(bf16)
    T = sro.shape[1]

    m_self = _user_mask(attn_mask, T, sro.shape[1])
    m_ce = _user_mask(attn_mask, T, ce.shape[1])
    m_ae = _user_mask(attn_mask, T, ae.shape[1])

    # Pre-project K/V heads once per attention (hoisted out of the flash kv loop).
    k_self, v_self = project_kv_heads(sro, params["masked_mha"], num_heads=heads)
    k_ce, v_ce = project_kv_heads(ce, params["cross_mha_1"], num_heads=heads)
    k_ae, v_ae = project_kv_heads(ae, params["cross_mha_2"], num_heads=heads)

    # masked self-attention + residual + norm1
    x1 = mha_block(sro, k_self, v_self, m_self, params["masked_mha"],
                   num_heads=heads, causal=True)
    # cross-attention 1 + residual + norm2
    x2 = mha_block(x1, k_ce, v_ce, m_ce, params["cross_mha_1"],
                   num_heads=heads, causal=False)
    # cross-attention 2 + residual + norm3, with the FFN fused in
    out = mha_block(x2, k_ae, v_ae, m_ae, params["cross_mha_2"],
                    num_heads=heads, causal=False,
                    ffn_p=params["ffn"], out_dtype=jnp.float32)
    return out


# ----------------------------- reference (plain JAX) --------------------------
# Mirrors the kernel's mixed-precision policy (bf16 matmul operands / weights,
# f32 accumulation, f32 softmax + LayerNorm + residual, bf16 stage storage,
# scale folded into Q before the bf16 cast).

def _ref_mha_block(q_in, kv_in, mask, p, num_heads, causal):
    B, T, D = q_in.shape
    S = kv_in.shape[1]
    dh = D // num_heads
    scale = 1.0 / math.sqrt(dh)
    f32, bf16 = jnp.float32, jnp.bfloat16

    q = (jnp.dot(q_in, p["wq"], preferred_element_type=f32) + p["bq"]) * scale
    k = jnp.dot(kv_in, p["wk"], preferred_element_type=f32) + p["bk"]
    v = jnp.dot(kv_in, p["wv"], preferred_element_type=f32) + p["bv"]
    qh = q.reshape(B, T, num_heads, dh).transpose(0, 2, 1, 3).astype(bf16)
    kh = k.reshape(B, S, num_heads, dh).transpose(0, 2, 1, 3).astype(bf16)
    vh = v.reshape(B, S, num_heads, dh).transpose(0, 2, 1, 3).astype(bf16)

    s = jnp.einsum("bhtd,bhsd->bhts", qh, kh, preferred_element_type=f32)
    s = s + jnp.broadcast_to(mask.astype(f32), (T, S))
    if causal:
        col_gt_row = jnp.arange(S)[None, :] > jnp.arange(T)[:, None]
        s = jnp.where(col_gt_row, NEG_INF, s)
    e = jnp.exp(s - jnp.max(s, axis=-1, keepdims=True))
    denom = jnp.sum(e, axis=-1, keepdims=True)
    ctx = jnp.einsum("bhts,bhsd->bhtd", e.astype(bf16), vh,
                     preferred_element_type=f32) / denom
    ctx = ctx.transpose(0, 2, 1, 3).reshape(B, T, D)

    attn = jnp.dot(ctx.astype(bf16), p["wo"], preferred_element_type=f32) + p["bo"]
    y = attn + q_in.astype(f32)
    return _layernorm(y, p["gamma"], p["beta"])


def _ref_decoder(params, sro, ce, ae, attn_mask, heads):
    bf16, f32 = jnp.bfloat16, jnp.float32
    x1 = _ref_mha_block(sro, sro, attn_mask, params["masked_mha"], heads,
                        True).astype(bf16)
    x2 = _ref_mha_block(x1, ce, attn_mask, params["cross_mha_1"], heads,
                        False).astype(bf16)
    x3 = _ref_mha_block(x2, ae, attn_mask, params["cross_mha_2"], heads, False)
    p = params["ffn"]
    h = jnp.dot(x3.astype(bf16), p["w1"], preferred_element_type=f32) + p["b1"]
    h = jnp.maximum(h, 0.0)
    return jnp.dot(h.astype(bf16), p["w2"], preferred_element_type=f32) + p["b2"]


# ----------------------------- params / main ---------------------------------

def init_params(key, embed_size, heads, dim_feedforward):
    D, F = embed_size, dim_feedforward
    keys = iter(jax.random.split(key, 64))
    bf16 = jnp.bfloat16

    def lin(d_in, d_out):
        w = (jax.random.normal(next(keys), (d_in, d_out), jnp.float32)
             / math.sqrt(d_in)).astype(bf16)               # bf16 weights
        b = 0.02 * jax.random.normal(next(keys), (1, d_out), jnp.float32)  # f32 biases
        return w, b

    def mha_params():
        wq, bq = lin(D, D); wk, bk = lin(D, D)
        wv, bv = lin(D, D); wo, bo = lin(D, D)
        gamma = 1.0 + 0.05 * jax.random.normal(next(keys), (1, D), jnp.float32)
        beta = 0.05 * jax.random.normal(next(keys), (1, D), jnp.float32)
        return dict(wq=wq, bq=bq, wk=wk, bk=bk, wv=wv, bv=bv, wo=wo, bo=bo,
                    gamma=gamma, beta=beta)

    w1, b1 = lin(D, F)
    w2, b2 = lin(F, D)
    return dict(masked_mha=mha_params(), cross_mha_1=mha_params(),
                cross_mha_2=mha_params(),
                ffn=dict(w1=w1, b1=b1, w2=w2, b2=b2))


if __name__ == "__main__":
    B, T, D, HEADS, FF = 2, 8, 32, 4, 64

    key = jax.random.PRNGKey(0)
    k_par, k_sro, k_ce, k_ae = jax.random.split(key, 4)
    params = init_params(k_par, D, HEADS, FF)

    shifted_right_outputs = jax.random.normal(k_sro, (B, T, D), jnp.float32)
    ce_outputs = jax.random.normal(k_ce, (B, T, D), jnp.float32)
    ae_outputs = jax.random.normal(k_ae, (B, T, D), jnp.float32)

    # additive attention mask: mask out the last key position for every query
    attn_mask = jnp.zeros((T, T), jnp.float32).at[:, -1].set(NEG_INF)

    out = decoder_layer_b(params, shifted_right_outputs, ce_outputs,
                          ae_outputs, attn_mask, heads=HEADS)
    out = jax.block_until_ready(out)

    ref = _ref_decoder(params,
                       shifted_right_outputs.astype(jnp.bfloat16),
                       ce_outputs.astype(jnp.bfloat16),
                       ae_outputs.astype(jnp.bfloat16),
                       attn_mask, HEADS)

    # Tolerance accounts for the approximate (EUP) softmax reciprocal and the
    # online-softmax accumulation order; bf16 operand / f32 accumulation policy
    # is mirrored in the reference.
    np.testing.assert_allclose(np.asarray(out, np.float32),
                               np.asarray(ref, np.float32),
                               rtol=2e-2, atol=2e-2)
    print("KERNEL_OK")
</pallas_src>

<mosaic_0001>
module attributes {stable_mosaic.version = 11 : i64} {
  func.func @_kv_project_kernel(%arg0: i32, %arg1: i32, %arg2: memref<1x8x32xbf16, #tpu.memory_space<vmem>>, %arg3: memref<32x32xbf16, #tpu.memory_space<vmem>>, %arg4: memref<1x32xf32, #tpu.memory_space<vmem>>, %arg5: memref<32x32xbf16, #tpu.memory_space<vmem>>, %arg6: memref<1x32xf32, #tpu.memory_space<vmem>>, %arg7: memref<1x4x8x8xbf16, #tpu.memory_space<vmem>>, %arg8: memref<1x4x8x8xbf16, #tpu.memory_space<vmem>>) attributes {dimension_semantics = [#tpu.dimension_semantics<parallel>, #tpu.dimension_semantics<parallel>], iteration_bounds = array<i64: 2, 1>, scalar_prefetch = 0 : i64, scratch_operands = 0 : i64, tpu.core_type = #tpu.core_type<tc>, window_params = [{transform_indices = @transform_0, window_bounds = array<i64: 1, 8, 32>}, {pipeline_mode = #tpu.pipeline_mode<synchronous>, transform_indices = @transform_1, window_bounds = array<i64: 32, 32>}, {pipeline_mode = #tpu.pipeline_mode<synchronous>, transform_indices = @transform_2, window_bounds = array<i64: 1, 32>}, {pipeline_mode = #tpu.pipeline_mode<synchronous>, transform_indices = @transform_3, window_bounds = array<i64: 32, 32>}, {pipeline_mode = #tpu.pipeline_mode<synchronous>, transform_indices = @transform_4, window_bounds = array<i64: 1, 32>}, {transform_indices = @transform_5, window_bounds = array<i64: 1, 4, 8, 8>}, {transform_indices = @transform_6, window_bounds = array<i64: 1, 4, 8, 8>}]} {
    %c0 = arith.constant 0 : index
    %c0_0 = arith.constant 0 : index
    %c0_1 = arith.constant 0 : index
    %0 = vector.load %arg2[%c0, %c0_0, %c0_1] : memref<1x8x32xbf16, #tpu.memory_space<vmem>>, vector<1x8x32xbf16>
    %1 = vector.shape_cast %0 : vector<1x8x32xbf16> to vector<8x32xbf16>
    %c0_2 = arith.constant 0 : index
    %c0_3 = arith.constant 0 : index
    %2 = vector.load %arg3[%c0_2, %c0_3] : memref<32x32xbf16, #tpu.memory_space<vmem>>, vector<32x32xbf16>
    %cst = arith.constant dense<0.000000e+00> : vector<8x32xf32>
    %3 = tpu.matmul %1, %2, %cst {dimension_numbers = #tpu.dot_dimension_numbers<[1], [0], [0], [1], [0, 0, 1, 1], [], []>} : vector<8x32xbf16>, vector<32x32xbf16>, vector<8x32xf32> -> vector<8x32xf32>
    %c0_4 = arith.constant 0 : index
    %c0_5 = arith.constant 0 : index
    %4 = vector.load %arg4[%c0_4, %c0_5] : memref<1x32xf32, #tpu.memory_space<vmem>>, vector<1x32xf32>
    %5 = vector.broadcast %4 : vector<1x32xf32> to vector<8x32xf32>
    %6 = arith.addf %3, %5 : vector<8x32xf32>
    %c0_6 = arith.constant 0 : index
    %c0_7 = arith.constant 0 : index
    %7 = vector.load %arg5[%c0_6, %c0_7] : memref<32x32xbf16, #tpu.memory_space<vmem>>, vector<32x32xbf16>
    %cst_8 = arith.constant dense<0.000000e+00> : vector<8x32xf32>
    %8 = tpu.matmul %1, %7, %cst_8 {dimension_numbers = #tpu.dot_dimension_numbers<[1], [0], [0], [1], [0, 0, 1, 1], [], []>} : vector<8x32xbf16>, vector<32x32xbf16>, vector<8x32xf32> -> vector<8x32xf32>
    %c0_9 = arith.constant 0 : index
    %c0_10 = arith.constant 0 : index
    %9 = vector.load %arg6[%c0_9, %c0_10] : memref<1x32xf32, #tpu.memory_space<vmem>>, vector<1x32xf32>
    %10 = vector.broadcast %9 : vector<1x32xf32> to vector<8x32xf32>
    %11 = arith.addf %8, %10 : vector<8x32xf32>
    %12 = vector.extract_strided_slice %6 {offsets = [0, 0], sizes = [8, 8], strides = [1, 1]} : vector<8x32xf32> to vector<8x8xf32>
    %13 = arith.truncf %12 : vector<8x8xf32> to vector<8x8xbf16>
    %c0_11 = arith.constant 0 : index
    %c0_12 = arith.constant 0 : index
    %c0_13 = arith.constant 0 : index
    %c0_14 = arith.constant 0 : index
    %14 = vector.load %arg7[%c0_11, %c0_12, %c0_13, %c0_14] : memref<1x4x8x8xbf16, #tpu.memory_space<vmem>>, vector<1x1x8x8xbf16>
    %15 = vector.shape_cast %14 : vector<1x1x8x8xbf16> to vector<8x8xbf16>
    %16 = vector.shape_cast %13 : vector<8x8xbf16> to vector<1x1x8x8xbf16>
    tpu.vector_store %arg7[%c0_11, %c0_12, %c0_13, %c0_14], %16 {strides = array<i32>} : memref<1x4x8x8xbf16, #tpu.memory_space<vmem>>, vector<1x1x8x8xbf16>,
    %17 = vector.extract_strided_slice %11 {offsets = [0, 0], sizes = [8, 8], strides = [1, 1]} : vector<8x32xf32> to vector<8x8xf32>
    %18 = arith.truncf %17 : vector<8x8xf32> to vector<8x8xbf16>
    %c0_15 = arith.constant 0 : index
    %c0_16 = arith.constant 0 : index
    %c0_17 = arith.constant 0 : index
    %c0_18 = arith.constant 0 : index
    %19 = vector.load %arg8[%c0_15, %c0_16, %c0_17, %c0_18] : memref<1x4x8x8xbf16, #tpu.memory_space<vmem>>, vector<1x1x8x8xbf16>
    %20 = vector.shape_cast %19 : vector<1x1x8x8xbf16> to vector<8x8xbf16>
    %21 = vector.shape_cast %18 : vector<8x8xbf16> to vector<1x1x8x8xbf16>
    tpu.vector_store %arg8[%c0_15, %c0_16, %c0_17, %c0_18], %21 {strides = array<i32>} : memref<1x4x8x8xbf16, #tpu.memory_space<vmem>>, vector<1x1x8x8xbf16>,
    %22 = vector.extract_strided_slice %6 {offsets = [0, 8], sizes = [8, 8], strides = [1, 1]} : vector<8x32xf32> to vector<8x8xf32>
    %23 = arith.truncf %22 : vector<8x8xf32> to vector<8x8xbf16>
    %c0_19 = arith.constant 0 : index
    %c1 = arith.constant 1 : index
    %c0_20 = arith.constant 0 : index
    %c0_21 = arith.constant 0 : index
    %24 = vector.load %arg7[%c0_19, %c1, %c0_20, %c0_21] : memref<1x4x8x8xbf16, #tpu.memory_space<vmem>>, vector<1x1x8x8xbf16>
    %25 = vector.shape_cast %24 : vector<1x1x8x8xbf16> to vector<8x8xbf16>
    %26 = vector.shape_cast %23 : vector<8x8xbf16> to vector<1x1x8x8xbf16>
    tpu.vector_store %arg7[%c0_19, %c1, %c0_20, %c0_21], %26 {strides = array<i32>} : memref<1x4x8x8xbf16, #tpu.memory_space<vmem>>, vector<1x1x8x8xbf16>,
    %27 = vector.extract_strided_slice %11 {offsets = [0, 8], sizes = [8, 8], strides = [1, 1]} : vector<8x32xf32> to vector<8x8xf32>
    %28 = arith.truncf %27 : vector<8x8xf32> to vector<8x8xbf16>
    %c0_22 = arith.constant 0 : index
    %c1_23 = arith.constant 1 : index
    %c0_24 = arith.constant 0 : index
    %c0_25 = arith.constant 0 : index
    %29 = vector.load %arg8[%c0_22, %c1_23, %c0_24, %c0_25] : memref<1x4x8x8xbf16, #tpu.memory_space<vmem>>, vector<1x1x8x8xbf16>
    %30 = vector.shape_cast %29 : vector<1x1x8x8xbf16> to vector<8x8xbf16>
    %31 = vector.shape_cast %28 : vector<8x8xbf16> to vector<1x1x8x8xbf16>
    tpu.vector_store %arg8[%c0_22, %c1_23, %c0_24, %c0_25], %31 {strides = array<i32>} : memref<1x4x8x8xbf16, #tpu.memory_space<vmem>>, vector<1x1x8x8xbf16>,
    %32 = vector.extract_strided_slice %6 {offsets = [0, 16], sizes = [8, 8], strides = [1, 1]} : vector<8x32xf32> to vector<8x8xf32>
    %33 = arith.truncf %32 : vector<8x8xf32> to vector<8x8xbf16>
    %c0_26 = arith.constant 0 : index
    %c2 = arith.constant 2 : index
    %c0_27 = arith.constant 0 : index
    %c0_28 = arith.constant 0 : index
    %34 = vector.load %arg7[%c0_26, %c2, %c0_27, %c0_28] : memref<1x4x8x8xbf16, #tpu.memory_space<vmem>>, vector<1x1x8x8xbf16>
    %35 = vector.shape_cast %34 : vector<1x1x8x8xbf16> to vector<8x8xbf16>
    %36 = vector.shape_cast %33 : vector<8x8xbf16> to vector<1x1x8x8xbf16>
    tpu.vector_store %arg7[%c0_26, %c2, %c0_27, %c0_28], %36 {strides = array<i32>} : memref<1x4x8x8xbf16, #tpu.memory_space<vmem>>, vector<1x1x8x8xbf16>,
    %37 = vector.extract_strided_slice %11 {offsets = [0, 16], sizes = [8, 8], strides = [1, 1]} : vector<8x32xf32> to vector<8x8xf32>
    %38 = arith.truncf %37 : vector<8x8xf32> to vector<8x8xbf16>
    %c0_29 = arith.constant 0 : index
    %c2_30 = arith.constant 2 : index
    %c0_31 = arith.constant 0 : index
    %c0_32 = arith.constant 0 : index
    %39 = vector.load %arg8[%c0_29, %c2_30, %c0_31, %c0_32] : memref<1x4x8x8xbf16, #tpu.memory_space<vmem>>, vector<1x1x8x8xbf16>
    %40 = vector.shape_cast %39 : vector<1x1x8x8xbf16> to vector<8x8xbf16>
    %41 = vector.shape_cast %38 : vector<8x8xbf16> to vector<1x1x8x8xbf16>
    tpu.vector_store %arg8[%c0_29, %c2_30, %c0_31, %c0_32], %41 {strides = array<i32>} : memref<1x4x8x8xbf16, #tpu.memory_space<vmem>>, vector<1x1x8x8xbf16>,
    %42 = vector.extract_strided_slice %6 {offsets = [0, 24], sizes = [8, 8], strides = [1, 1]} : vector<8x32xf32> to vector<8x8xf32>
    %43 = arith.truncf %42 : vector<8x8xf32> to vector<8x8xbf16>
    %c0_33 = arith.constant 0 : index
    %c3 = arith.constant 3 : index
    %c0_34 = arith.constant 0 : index
    %c0_35 = arith.constant 0 : index
    %44 = vector.load %arg7[%c0_33, %c3, %c0_34, %c0_35] : memref<1x4x8x8xbf16, #tpu.memory_space<vmem>>, vector<1x1x8x8xbf16>
    %45 = vector.shape_cast %44 : vector<1x1x8x8xbf16> to vector<8x8xbf16>
    %46 = vector.shape_cast %43 : vector<8x8xbf16> to vector<1x1x8x8xbf16>
    tpu.vector_store %arg7[%c0_33, %c3, %c0_34, %c0_35], %46 {strides = array<i32>} : memref<1x4x8x8xbf16, #tpu.memory_space<vmem>>, vector<1x1x8x8xbf16>,
    %47 = vector.extract_strided_slice %11 {offsets = [0, 24], sizes = [8, 8], strides = [1, 1]} : vector<8x32xf32> to vector<8x8xf32>
    %48 = arith.truncf %47 : vector<8x8xf32> to vector<8x8xbf16>
    %c0_36 = arith.constant 0 : index
    %c3_37 = arith.constant 3 : index
    %c0_38 = arith.constant 0 : index
    %c0_39 = arith.constant 0 : index
    %49 = vector.load %arg8[%c0_36, %c3_37, %c0_38, %c0_39] : memref<1x4x8x8xbf16, #tpu.memory_space<vmem>>, vector<1x1x8x8xbf16>
    %50 = vector.shape_cast %49 : vector<1x1x8x8xbf16> to vector<8x8xbf16>
    %51 = vector.shape_cast %48 : vector<8x8xbf16> to vector<1x1x8x8xbf16>
    tpu.vector_store %arg8[%c0_36, %c3_37, %c0_38, %c0_39], %51 {strides = array<i32>} : memref<1x4x8x8xbf16, #tpu.memory_space<vmem>>, vector<1x1x8x8xbf16>,
    return
  }
  func.func @transform_0(%arg0: i32, %arg1: i32) -> (i32, i32, i32) {
    %c0_i32 = arith.constant 0 : i32
    %c0_i32_0 = arith.constant 0 : i32
    return %arg0, %arg1, %c0_i32 : i32, i32, i32
  }
  func.func @transform_1(%arg0: i32, %arg1: i32) -> (i32, i32) {
    %c0_i32 = arith.constant 0 : i32
    %c0_i32_0 = arith.constant 0 : i32
    %c0_i32_1 = arith.constant 0 : i32
    return %c0_i32, %c0_i32_0 : i32, i32
  }
  func.func @transform_2(%arg0: i32, %arg1: i32) -> (i32, i32) {
    %c0_i32 = arith.constant 0 : i32
    %c0_i32_0 = arith.constant 0 : i32
    %c0_i32_1 = arith.constant 0 : i32
    return %c0_i32, %c0_i32_0 : i32, i32
  }
  func.func @transform_3(%arg0: i32, %arg1: i32) -> (i32, i32) {
    %c0_i32 = arith.constant 0 : i32
    %c0_i32_0 = arith.constant 0 : i32
    %c0_i32_1 = arith.constant 0 : i32
    return %c0_i32, %c0_i32_0 : i32, i32
  }
  func.func @transform_4(%arg0: i32, %arg1: i32) -> (i32, i32) {
    %c0_i32 = arith.constant 0 : i32
    %c0_i32_0 = arith.constant 0 : i32
    %c0_i32_1 = arith.constant 0 : i32
    return %c0_i32, %c0_i32_0 : i32, i32
  }
  func.func @transform_5(%arg0: i32, %arg1: i32) -> (i32, i32, i32, i32) {
    %c0_i32 = arith.constant 0 : i32
    %c0_i32_0 = arith.constant 0 : i32
    %c0_i32_1 = arith.constant 0 : i32
    return %arg0, %c0_i32, %arg1, %c0_i32_0 : i32, i32, i32, i32
  }
  func.func @transform_6(%arg0: i32, %arg1: i32) -> (i32, i32, i32, i32) {
    %c0_i32 = arith.constant 0 : i32
    %c0_i32_0 = arith.constant 0 : i32
    %c0_i32_1 = arith.constant 0 : i32
    return %arg0, %c0_i32, %arg1, %c0_i32_0 : i32, i32, i32, i32
  }
}

</mosaic_0001>

<llo_original>
// kernel: tpu_custom_call.1
$region0: #{tpu_custom_call.1}
  #allocation0 [shape = 'u32[]', space=smem, size = 0x4, offset = 0x4, fixed_abs, tag = 'smem constant byte address 0x4 - core index']
  #allocation1 [shape = 'u32[144,128]{1,0:T(1,128)}', space=vmem, size = 0x12000, scoped, tag = 'internal scratch']
  %s0 = inlined_call_operand.hbm [shape: bf16[2,8,32], index: 0, kind: input, shape index: {}]
  %s1 = inlined_call_operand.hbm [shape: bf16[32,32], index: 1, kind: input, shape index: {}]
  %s2 = inlined_call_operand.vmem [shape: f32[1,32], index: 2, kind: input, shape index: {}]
  %s3 = inlined_call_operand.hbm [shape: bf16[32,32], index: 3, kind: input, shape index: {}]
  %s4 = inlined_call_operand.vmem [shape: f32[1,32], index: 4, kind: input, shape index: {}]
  %s5 = inlined_call_operand.hbm [shape: bf16[2,4,8,8], index: 5, kind: output, shape index: {0}]
  %s6 = inlined_call_operand.hbm [shape: bf16[2,4,8,8], index: 6, kind: output, shape index: {1}]
  %7 = xla_tuple %s5, %s6
  %s8 = sld [smem:[#allocation0]]
  $region73: #{tpu_custom_call.1} parent=0
    _
  %s10 = ssub.s32 1, %s8
  %s11 = scalar_select 0, %s10, %s8
  $region1: #{tpu_custom_call.1} parent=0
    #allocation2 [shape = 'u8[4096]{0}', space=vmem, size = 0x1000, scoped, tag = 'input window, operand 0']
    #allocation3 [shape = 's32[2]{0}', space=sflag, size = 0x8, scoped, tag = 'scoped memory for tpu_custom_call.1']
    #allocation4 [shape = 's32[2]{0}', space=sflag, size = 0x8, scoped, tag = 'scoped memory for tpu_custom_call.1']
    #allocation5 [shape = 'u8[8192]{0}', space=vmem, size = 0x2000, scoped, tag = 'input window, operand 1, single buffered']
    #allocation6 [shape = 's32[1]{0}', space=sflag, size = 0x4, scoped, tag = 'scoped memory for tpu_custom_call.1']
    #allocation7 [shape = 'u8[8192]{0}', space=vmem, size = 0x2000, scoped, tag = 'input window, operand 3, single buffered']
    #allocation8 [shape = 'u8[16384]{0}', space=vmem, size = 0x4000, scoped, tag = 'output window, operand 0']
    #allocation9 [shape = 'u8[16384]{0}', space=vmem, size = 0x4000, scoped, tag = 'output window, operand 1']
    #allocation10 [shape = 's32[2]{0}', space=sflag, size = 0x8, scoped, tag = 'scoped memory for tpu_custom_call.1']
    %12 = vsyncpa [#allocation3], 0
    %s13 = scalar_lea.sflag [#allocation3], 1
    %14 = vsyncpa %s13, 0
    %15 = vsyncpa [#allocation6], 0
    %16 = vsyncpa [#allocation4], 0
    %s17 = scalar_lea.sflag [#allocation4], 1
    %18 = vsyncpa %s17, 0
    %19 = vsyncpa [#allocation10], 0
    %s20 = scalar_lea.sflag [#allocation10], 1
    %21 = vsyncpa %s20, 0
    loop: start=0, step=1, limit=4
    $region2: #{tpu_custom_call.1} parent=1 // loop_pre_header
      _
    $region3: #{tpu_custom_call.1} parent=1 // loop_header
      %s23 = sphi 0, %s27
      %p24 = scmp.ge.s32.totalorder %s23, 4
      %s30 = sphi 0, %s42
      %s31 = sphi 0, %s38
      %s32 = sphi 0, %s30
      %s33 = sphi 0, %s31
      %s34 = sphi 0, %s32
      %s35 = sphi 0, %s33
      %s47 = sphi 0, %s49
      %s50 = sphi 0, %s47
      %s51 = sphi 0, %s50
      %s67 = sphi 0, %s51
      %s71 = sphi 0, %s71
      %s73 = sphi 0, %s71
      %s74 = sphi 0, %s73
      %s88 = sphi 0, %s74
      %s92 = sphi 0, %s92
      %s94 = sphi 0, %s92
      %s95 = sphi 0, %s94
      %s109 = sphi 0, %s95
      %s113 = sphi 0, %s113
      %s115 = sphi 0, %s113
      %s116 = sphi 0, %s115
      %s130 = sphi 0, %s116
      %s134 = sphi 0, %s134
      %s136 = sphi 0, %s134
      %s137 = sphi 0, %s136
      %s151 = sphi 0, %s137
      %s159 = sphi 0, %s161
      %s162 = sphi 0, %s159
      %s163 = sphi 0, %s162
      %s179 = sphi 0, %s163
      %s187 = sphi 0, %s189
      %s190 = sphi 0, %s187
      %s191 = sphi 0, %s190
      %s207 = sphi 0, %s191
    $region4: #{tpu_custom_call.1} parent=1 // loop_header_branch
      %26 = sbr.rel (%p24) target = $region8
    $region5: #{tpu_custom_call.1} parent=1 // loop_body
      %s28 = ssub.s32 %s23, 1
      %s29 = ssub.s32 %s23, 2
      %s36 = sadd.s32 1, %s31
      %p37 = scmp.ge.s32.totalorder %s36, 1
      %s38 = scalar_select %p37, 0, %s36
      %s39 = sadd.s32 1, %s30
      %s40 = scalar_select %p37, %s39, %s30
      %p41 = scmp.ge.s32.totalorder %s40, 2
      %s42 = scalar_select %p41, 0, %s40
      %s43 = ssub.s32 %s30, %s42
      %s44 = ssub.s32 %s31, %s38
      %s45 = sor.u32 %s43, %s44
      %p46 = scmp.eq.s32.totalorder %s45, 0
      %s48 = sadd.s32 %s47, 1
      %s49 = scalar_select %p46, %s47, %s48
      %p52 = pneg %p46
      %p53 = scmp.eq.s32.totalorder %s23, 1
      %p54 = por %p52, %p53
      %p55 = scmp.ne.s32.totalorder %s47, %s50
      %p56 = scmp.eq.s32.totalorder %s23, 0
      %p57 = por %p55, %p56
      %p58 = scmp.ne.s32.totalorder %s47, %s50
      %p59 = scmp.eq.s32.totalorder %s28, 1
      %p60 = por %p58, %p59
      %p61 = scmp.ne.s32.totalorder %s50, %s51
      %p62 = scmp.eq.s32.totalorder %s28, 0
      %p63 = por %p61, %p62
      %p64 = scmp.ne.s32.totalorder %s50, %s51
      %p65 = scmp.eq.s32.totalorder %s29, 1
      %p66 = por %p64, %p65
      %p68 = scmp.ne.s32.totalorder %s51, %s67
      %p69 = scmp.eq.s32.totalorder %s29, 0
      %p70 = por %p68, %p69
      %s72 = sadd.s32 %s71, 1
      %p75 = scmp.eq.s32.totalorder %s23, 1
      %p76 = scmp.ne.s32.totalorder %s71, %s73
      %p77 = scmp.eq.s32.totalorder %s23, 0
      %p78 = por %p76, %p77
      %p79 = scmp.ne.s32.totalorder %s71, %s73
      %p80 = scmp.eq.s32.totalorder %s28, 1
      %p81 = por %p79, %p80
      %p82 = scmp.ne.s32.totalorder %s73, %s74
      %p83 = scmp.eq.s32.totalorder %s28, 0
      %p84 = por %p82, %p83
      %p85 = scmp.ne.s32.totalorder %s73, %s74
      %p86 = scmp.eq.s32.totalorder %s29, 1
      %p87 = por %p85, %p86
      %p89 = scmp.ne.s32.totalorder %s74, %s88
      %p90 = scmp.eq.s32.totalorder %s29, 0
      %p91 = por %p89, %p90
      %s93 = sadd.s32 %s92, 1
      %p96 = scmp.eq.s32.totalorder %s23, 1
      %p97 = scmp.ne.s32.totalorder %s92, %s94
      %p98 = scmp.eq.s32.totalorder %s23, 0
      %p99 = por %p97, %p98
      %p100 = scmp.ne.s32.totalorder %s92, %s94
      %p101 = scmp.eq.s32.totalorder %s28, 1
      %p102 = por %p100, %p101
      %p103 = scmp.ne.s32.totalorder %s94, %s95
      %p104 = scmp.eq.s32.totalorder %s28, 0
      %p105 = por %p103, %p104
      %p106 = scmp.ne.s32.totalorder %s94, %s95
      %p107 = scmp.eq.s32.totalorder %s29, 1
      %p108 = por %p106, %p107
      %p110 = scmp.ne.s32.totalorder %s95, %s109
      %p111 = scmp.eq.s32.totalorder %s29, 0
      %p112 = por %p110, %p111
      %s114 = sadd.s32 %s113, 1
      %p117 = scmp.eq.s32.totalorder %s23, 1
      %p118 = scmp.ne.s32.totalorder %s113, %s115
      %p119 = scmp.eq.s32.totalorder %s23, 0
      %p120 = por %p118, %p119
      %p121 = scmp.ne.s32.totalorder %s113, %s115
      %p122 = scmp.eq.s32.totalorder %s28, 1
      %p123 = por %p121, %p122
      %p124 = scmp.ne.s32.totalorder %s115, %s116
      %p125 = scmp.eq.s32.totalorder %s28, 0
      %p126 = por %p124, %p125
      %p127 = scmp.ne.s32.totalorder %s115, %s116
      %p128 = scmp.eq.s32.totalorder %s29, 1
      %p129 = por %p127, %p128
      %p131 = scmp.ne.s32.totalorder %s116, %s130
      %p132 = scmp.eq.s32.totalorder %s29, 0
      %p133 = por %p131, %p132
      %s135 = sadd.s32 %s134, 1
      %p138 = scmp.eq.s32.totalorder %s23, 1
      %p139 = scmp.ne.s32.totalorder %s134, %s136
      %p140 = scmp.eq.s32.totalorder %s23, 0
      %p141 = por %p139, %p140
      %p142 = scmp.ne.s32.totalorder %s134, %s136
      %p143 = scmp.eq.s32.totalorder %s28, 1
      %p144 = por %p142, %p143
      %p145 = scmp.ne.s32.totalorder %s136, %s137
      %p146 = scmp.eq.s32.totalorder %s28, 0
      %p147 = por %p145, %p146
      %p148 = scmp.ne.s32.totalorder %s136, %s137
      %p149 = scmp.eq.s32.totalorder %s29, 1
      %p150 = por %p148, %p149
      %p152 = scmp.ne.s32.totalorder %s137, %s151
      %p153 = scmp.eq.s32.totalorder %s29, 0
      %p154 = por %p152, %p153
      %s155 = ssub.s32 %s30, %s42
      %s156 = ssub.s32 %s31, %s38
      %s157 = sor.u32 %s155, %s156
      %p158 = scmp.eq.s32.totalorder %s157, 0
      %s160 = sadd.s32 %s159, 1
      %s161 = scalar_select %p158, %s159, %s160
      %p164 = pneg %p158
      %p165 = scmp.eq.s32.totalorder %s23, 1
      %p166 = por %p164, %p165
      %p167 = scmp.ne.s32.totalorder %s159, %s162
      %p168 = scmp.eq.s32.totalorder %s23, 0
      %p169 = por %p167, %p168
      %p170 = scmp.ne.s32.totalorder %s159, %s162
      %p171 = scmp.eq.s32.totalorder %s28, 1
      %p172 = por %p170, %p171
      %p173 = scmp.ne.s32.totalorder %s162, %s163
      %p174 = scmp.eq.s32.totalorder %s28, 0
      %p175 = por %p173, %p174
      %p176 = scmp.ne.s32.totalorder %s162, %s163
      %p177 = scmp.eq.s32.totalorder %s29, 1
      %p178 = por %p176, %p177
      %p180 = scmp.ne.s32.totalorder %s163, %s179
      %p181 = scmp.eq.s32.totalorder %s29, 0
      %p182 = por %p180, %p181
      %s183 = ssub.s32 %s30, %s42
      %s184 = ssub.s32 %s31, %s38
      %s185 = sor.u32 %s183, %s184
      %p186 = scmp.eq.s32.totalorder %s185, 0
      %s188 = sadd.s32 %s187, 1
      %s189 = scalar_select %p186, %s187, %s188
      %p192 = pneg %p186
      %p193 = scmp.eq.s32.totalorder %s23, 1
      %p194 = por %p192, %p193
      %p195 = scmp.ne.s32.totalorder %s187, %s190
      %p196 = scmp.eq.s32.totalorder %s23, 0
      %p197 = por %p195, %p196
      %p198 = scmp.ne.s32.totalorder %s187, %s190
      %p199 = scmp.eq.s32.totalorder %s28, 1
      %p200 = por %p198, %p199
      %p201 = scmp.ne.s32.totalorder %s190, %s191
      %p202 = scmp.eq.s32.totalorder %s28, 0
      %p203 = por %p201, %p202
      %p204 = scmp.ne.s32.totalorder %s190, %s191
      %p205 = scmp.eq.s32.totalorder %s29, 1
      %p206 = por %p204, %p205
      %p208 = scmp.ne.s32.totalorder %s191, %s207
      %p209 = scmp.eq.s32.totalorder %s29, 0
      %p210 = por %p208, %p209
      %p211 = scmp.le.s32.totalorder 1, %s23
      %p212 = scmp.lt.s32.totalorder %s23, 3
      %p213 = pnand %p211, %p212
      %p214 = pneg %p213
      // Predicated region
      $region9: #{tpu_custom_call.1} parent=5 // pred_check
        _
      $region10: #{tpu_custom_call.1} parent=5 // pred_check_branch
        %216 = sbr.rel (%p213) target = $region12
      $region11: #{tpu_custom_call.1} parent=5 // pred_region
        %s217 = ssub.s32 %s23, 1
        // Predicated region
        $region13: #{tpu_custom_call.1} parent=11 // pred_check
          %p218 = pneg %p84
        $region14: #{tpu_custom_call.1} parent=11 // pred_check_branch
          %220 = sbr.rel (%p218) target = $region16
        $region15: #{tpu_custom_call.1} parent=11 // pred_region
          %s222 = ssub.s32 256, 256
          %223 = vsyncadd [#allocation6], %s222
          %s224 = sshll.u32 [#allocation5], 4
          %s225 = int_to_ptr.vmem [resolvable:$true] %s224
          %230 = dma.hbm_to_vmem [thread:$0]  %s1, 256, %s225, [#allocation6], 64, 64, 4
        $region16: #{tpu_custom_call.1} parent=11 // pred_fallthru
          _
        // Predicated region
        $region17: #{tpu_custom_call.1} parent=11 // pred_check
          %p231 = pneg %p105
        $region18: #{tpu_custom_call.1} parent=11 // pred_check_branch
          %233 = sbr.rel (%p231) target = $region20
        $region19: #{tpu_custom_call.1} parent=11 // pred_region
          _
        $region20: #{tpu_custom_call.1} parent=11 // pred_fallthru
          _
        // Predicated region
        $region21: #{tpu_custom_call.1} parent=11 // pred_check
          %p234 = pneg %p126
        $region22: #{tpu_custom_call.1} parent=11 // pred_check_branch
          %236 = sbr.rel (%p234) target = $region24
        $region23: #{tpu_custom_call.1} parent=11 // pred_region
          %s238 = ssub.s32 256, 256
          %239 = vsyncadd [#allocation6], %s238
          %s240 = sshll.u32 [#allocation7], 4
          %s241 = int_to_ptr.vmem [resolvable:$true] %s240
          %246 = dma.hbm_to_vmem [thread:$0]  %s3, 256, %s241, [#allocation6], 64, 64, 4
        $region24: #{tpu_custom_call.1} parent=11 // pred_fallthru
          _
        // Predicated region
        $region25: #{tpu_custom_call.1} parent=11 // pred_check
          %p247 = pneg %p147
        $region26: #{tpu_custom_call.1} parent=11 // pred_check_branch
          %249 = sbr.rel (%p247) target = $region28
        $region27: #{tpu_custom_call.1} parent=11 // pred_region
          _
        $region28: #{tpu_custom_call.1} parent=11 // pred_fallthru
          _
      $region12: #{tpu_custom_call.1} parent=5 // pred_fallthru
        _
      %p250 = scmp.lt.s32.totalorder %s23, 2
      // Predicated region
      $region29: #{tpu_custom_call.1} parent=5 // pred_check
        %p251 = pneg %p250
      $region30: #{tpu_custom_call.1} parent=5 // pred_check_branch
        %253 = sbr.rel (%p251) target = $region32
      $region31: #{tpu_custom_call.1} parent=5 // pred_region
        // Predicated region
        $region33: #{tpu_custom_call.1} parent=31 // pred_check
          %p254 = pneg %p57
        $region34: #{tpu_custom_call.1} parent=31 // pred_check_branch
          %256 = sbr.rel (%p254) target = $region36
        $region35: #{tpu_custom_call.1} parent=31 // pred_region
          %s257 = sand.u32 %s47, 1
          %s258 = scalar_lea.sflag [#allocation3], %s257
          %s259 = sand.u32 %s47, 1
          %s260 = smul.addr %s259, 4
          %s261 = scalar_lea.vmem [#allocation2], %s260
          %s263 = ssub.s32 64, 64
          %264 = vsyncadd %s258, %s263
          %s265 = sadd.s32 %s31, %s30
          %s266 = smul.addr %s265, 64
          %s267 = scalar_lea.hbm %s0, %s266
          %s269 = sshll.u32 %s261, 4
          %s270 = int_to_ptr.vmem [resolvable:$true] %s269
          %272 = dma.hbm_to_vmem [thread:$0]  %s267, 64, %s270, %s258
        $region36: #{tpu_custom_call.1} parent=31 // pred_fallthru
          _
      $region32: #{tpu_custom_call.1} parent=5 // pred_fallthru
        _
      %p273 = scmp.le.s32.totalorder 1, %s23
      %p274 = scmp.lt.s32.totalorder %s23, 3
      %p275 = pnand %p273, %p274
      %p276 = pneg %p275
      // Predicated region
      $region37: #{tpu_custom_call.1} parent=5 // pred_check
        _
      $region38: #{tpu_custom_call.1} parent=5 // pred_check_branch
        %278 = sbr.rel (%p275) target = $region40
      $region39: #{tpu_custom_call.1} parent=5 // pred_region
        %s279 = ssub.s32 %s23, 1
        %s280 = sand.u32 %s50, 1
        %s281 = scalar_lea.sflag [#allocation3], %s280
        %s282 = sand.u32 %s50, 1
        %s283 = smul.addr %s282, 4
        %s284 = scalar_lea.vmem [#allocation2], %s283
        // Predicated region
        $region41: #{tpu_custom_call.1} parent=39 // pred_check
          %p285 = pneg %p63
        $region42: #{tpu_custom_call.1} parent=39 // pred_check_branch
          %287 = sbr.rel (%p285) target = $region44
        $region43: #{tpu_custom_call.1} parent=39 // pred_region
          %288 = dma.done %s281, 64
        $region44: #{tpu_custom_call.1} parent=39 // pred_fallthru
          _
        // Predicated region
        $region45: #{tpu_custom_call.1} parent=39 // pred_check
          %p289 = pneg %p84
        $region46: #{tpu_custom_call.1} parent=39 // pred_check_branch
          %291 = sbr.rel (%p289) target = $region48
        $region47: #{tpu_custom_call.1} parent=39 // pred_region
          %292 = dma.done [#allocation6], 256
        $region48: #{tpu_custom_call.1} parent=39 // pred_fallthru
          _
        // Predicated region
        $region49: #{tpu_custom_call.1} parent=39 // pred_check
          %p293 = pneg %p126
        $region50: #{tpu_custom_call.1} parent=39 // pred_check_branch
          %295 = sbr.rel (%p293) target = $region52
        $region51: #{tpu_custom_call.1} parent=39 // pred_region
          %296 = dma.done [#allocation6], 256
        $region52: #{tpu_custom_call.1} parent=39 // pred_fallthru
          _
        %s297 = sand.u32 %s50, 1
        %s298 = scalar_lea.sflag [#allocation3], %s297
        %s299 = sand.u32 %s50, 1
        %s300 = smul.addr %s299, 4
        %s301 = scalar_lea.vmem [#allocation2], %s300
        %p302 = pneg %p63
        %p303 = pneg %p60
        %p304 = pneg %p84
        %p305 = pneg %p81
        %p306 = pneg %p105
        %p307 = pneg %p102
        %p308 = pneg %p126
        %p309 = pneg %p123
        %p310 = pneg %p147
        %p311 = pneg %p144
        %p312 = pneg %p175
        %p313 = pneg %p172
        %s314 = sand.u32 %s162, 1
        %s315 = scalar_lea.sflag [#allocation4], %s314
        %s316 = sand.u32 %s162, 1
        %s317 = smul.addr %s316, 16
        %s318 = scalar_lea.vmem [#allocation8], %s317
        %p319 = pneg %p203
        %p320 = pneg %p200
        %s321 = sand.u32 %s190, 1
        %s322 = scalar_lea.sflag [#allocation10], %s321
        %s323 = sand.u32 %s190, 1
        %s324 = smul.addr %s323, 16
        %s325 = scalar_lea.vmem [#allocation9], %s324
        %v327 = vld [vmem:[%s284] sm:$0xf]
        %v328 = vld [vmem:[#allocation5] sm:$0xf]
        %v329 = vld [vmem:[#allocation5 + $0x4] sm:$0xf]
        %v330 = vld [vmem:[#allocation5 + $0x8] sm:$0xf]
        %v331 = vld [vmem:[#allocation5 + $0xc] sm:$0xf]
        %v332 = vld [vmem:[%s2] sm:$0x1]
        %v334 = vlaneseq
        %v335 = vshrl.u32 %v334, 7
        %v336 = vsub.s32 0, %v335
        %v337 = vrot.slane %v332, %v336
        %v343 = vunpack.c.l.b16 %v328
        %v344 = vunpack.c.l.b16 %v329
        %v345 = vunpack.c.l.b16 %v330
        %v346 = vunpack.c.l.b16 %v331
        %v347 = vpack.c.b16 %v344, %v343
        %v348 = vpack.c.b16 %v346, %v345
        %vm351 = vcmask 261120
        %v353 = vsel %vm351, %v327, 0
        %355 = vmatprep.subr.bf16.mxu0 0
        %356 = vmatpush1.bf16.msra.mxu0 %v347
        %357 = vmatprep.subr.bf16.mxu0 0
        %358 = vmatpush1.bf16.msra.mxu0 %v348
        %359 = vmatprep.subr.bf16.mxu0 0
        %360 = vmatpush1.bf16.msra.mxu0 0
        %361 = vmatprep.subr.bf16.mxu0 0
        %362 = vmatpush1.bf16.msra.mxu0 0
        %363 = vmatprep.subr.bf16.mxu0 0
        %364 = vmatpush1.bf16.msra.mxu0 0
        %365 = vmatprep.subr.bf16.mxu0 0
        %366 = vmatpush1.bf16.msra.mxu0 0
        %367 = vmatprep.subr.bf16.mxu0 0
        %368 = vmatpush1.bf16.msra.mxu0 0
        %369 = vmatprep.subr.bf16.mxu0 0
        %370 = vmatpush1.bf16.msra.mxu0 0
        %371 = vmatprep.subr.bf16.mxu0 0
        %372 = vmatpush1.bf16.msra.mxu0 0
        %373 = vmatprep.subr.bf16.mxu0 0
        %374 = vmatpush1.bf16.msra.mxu0 0
        %375 = vmatprep.subr.bf16.mxu0 0
        %376 = vmatpush1.bf16.msra.mxu0 0
        %377 = vmatprep.subr.bf16.mxu0 0
        %378 = vmatpush1.bf16.msra.mxu0 0
        %379 = vmatprep.subr.bf16.mxu0 0
        %380 = vmatpush1.bf16.msra.mxu0 0
        %381 = vmatprep.subr.bf16.mxu0 0
        %382 = vmatpush1.bf16.msra.mxu0 0
        %383 = vmatprep.subr.bf16.mxu0 0
        %384 = vmatpush1.bf16.msra.mxu0 0
        %385 = vmatprep.subr.bf16.mxu0 0
        %386 = vmatpush1.bf16.msra.mxu0 0
        %387 = vmatprep.mubr.bf16.mxu0 0
        %388 = vmatmul.mubr.bf16.gmra.mrb[0].mxu0 %v353
        %v389 = vpop.f32.mrb[0].mxu0
        %v390 = vadd.f32 %v337, %v389
        %v391 = vpop.f32.mrb[0].mxu0
        %v392 = vpop.f32.mrb[0].mxu0
        %v393 = vpop.f32.mrb[0].mxu0
        %394 = vdwg.mxu0
        %v395 = vld [vmem:[#allocation7] sm:$0xf]
        %v396 = vld [vmem:[#allocation7 + $0x4] sm:$0xf]
        %v397 = vld [vmem:[#allocation7 + $0x8] sm:$0xf]
        %v398 = vld [vmem:[#allocation7 + $0xc] sm:$0xf]
        %v399 = vld [vmem:[%s4] sm:$0x1]
        %v401 = vlaneseq
        %v402 = vshrl.u32 %v401, 7
        %v403 = vsub.s32 0, %v402
        %v404 = vrot.slane %v399, %v403
        %v410 = vunpack.c.l.b16 %v395
        %v411 = vunpack.c.l.b16 %v396
        %v412 = vunpack.c.l.b16 %v397
        %v413 = vunpack.c.l.b16 %v398
        %v414 = vpack.c.b16 %v411, %v410
        %v415 = vpack.c.b16 %v413, %v412
        %418 = vmatprep.subr.bf16.mxu0 0
        %419 = vmatpush1.bf16.msra.mxu0 %v414
        %420 = vmatprep.subr.bf16.mxu0 0
        %421 = vmatpush1.bf16.msra.mxu0 %v415
        %422 = vmatprep.subr.bf16.mxu0 0
        %423 = vmatpush1.bf16.msra.mxu0 0
        %424 = vmatprep.subr.bf16.mxu0 0
        %425 = vmatpush1.bf16.msra.mxu0 0
        %426 = vmatprep.subr.bf16.mxu0 0
        %427 = vmatpush1.bf16.msra.mxu0 0
        %428 = vmatprep.subr.bf16.mxu0 0
        %429 = vmatpush1.bf16.msra.mxu0 0
        %430 = vmatprep.subr.bf16.mxu0 0
        %431 = vmatpush1.bf16.msra.mxu0 0
        %432 = vmatprep.subr.bf16.mxu0 0
        %433 = vmatpush1.bf16.msra.mxu0 0
        %434 = vmatprep.subr.bf16.mxu0 0
        %435 = vmatpush1.bf16.msra.mxu0 0
        %436 = vmatprep.subr.bf16.mxu0 0
        %437 = vmatpush1.bf16.msra.mxu0 0
        %438 = vmatprep.subr.bf16.mxu0 0
        %439 = vmatpush1.bf16.msra.mxu0 0
        %440 = vmatprep.subr.bf16.mxu0 0
        %441 = vmatpush1.bf16.msra.mxu0 0
        %442 = vmatprep.subr.bf16.mxu0 0
        %443 = vmatpush1.bf16.msra.mxu0 0
        %444 = vmatprep.subr.bf16.mxu0 0
        %445 = vmatpush1.bf16.msra.mxu0 0
        %446 = vmatprep.subr.bf16.mxu0 0
        %447 = vmatpush1.bf16.msra.mxu0 0
        %448 = vmatprep.subr.bf16.mxu0 0
        %449 = vmatpush1.bf16.msra.mxu0 0
        %450 = vmatprep.mubr.bf16.mxu0 0
        %451 = vmatmul.mubr.bf16.gmra.mrb[0].mxu0 %v353
        %v452 = vpop.f32.mrb[0].mxu0
        %v453 = vadd.f32 %v404, %v452
        %v454 = vpop.f32.mrb[0].mxu0
        %v455 = vpop.f32.mrb[0].mxu0
        %v456 = vpop.f32.mrb[0].mxu0
        %457 = vdwg.mxu0
        %v458 = vpack.c.bf16 %v390, %v390
        %vm459 = vcmask 60416
        %460 = vst.msk [vmem:[%s318] sm:$0xf] %vm459, %v458
        %v461 = vpack.c.bf16 %v453, %v453
        %462 = vst.msk [vmem:[%s325] sm:$0xf] %vm459, %v461
        %v464 = vunpack.c.l.b16 %v458
        %v465 = vpack.c.b16 %v464, %v464
        %466 = vrot.lane.b32.xlu0 %v465, 120
        %v467 = vpop.permute.xlu0 %466
        %s469 = scalar_lea.vmem %s318, 4 [#allocation8]
        %470 = vst.msk [vmem:[%s469] sm:$0xf] %vm459, %v467
        %v472 = vunpack.c.l.b16 %v461
        %v473 = vpack.c.b16 %v472, %v472
        %474 = vrot.lane.b32.xlu0 %v473, 120
        %v475 = vpop.permute.xlu0 %474
        %s477 = scalar_lea.vmem %s325, 4 [#allocation9]
        %478 = vst.msk [vmem:[%s477] sm:$0xf] %vm459, %v475
        %479 = vrot.lane.b32.xlu0 %v465, 112
        %v480 = vpop.permute.xlu0 %479
        %s482 = scalar_lea.vmem %s318, 8 [#allocation8]
        %483 = vst.msk [vmem:[%s482] sm:$0xf] %vm459, %v480
        %484 = vrot.lane.b32.xlu0 %v473, 112
        %v485 = vpop.permute.xlu0 %484
        %s487 = scalar_lea.vmem %s325, 8 [#allocation9]
        %488 = vst.msk [vmem:[%s487] sm:$0xf] %vm459, %v485
        %489 = vrot.lane.b32.xlu0 %v465, 104
        %v490 = vpop.permute.xlu0 %489
        %s492 = scalar_lea.vmem %s318, 12 [#allocation8]
        %493 = vst.msk [vmem:[%s492] sm:$0xf] %vm459, %v490
        %494 = vrot.lane.b32.xlu0 %v473, 104
        %v495 = vpop.permute.xlu0 %494
        %s497 = scalar_lea.vmem %s325, 12 [#allocation9]
        %498 = vst.msk [vmem:[%s497] sm:$0xf] %vm459, %v495
        %s499 = sand.u32 %s162, 1
        %s500 = scalar_lea.sflag [#allocation4], %s499
        %s501 = sand.u32 %s162, 1
        %s502 = smul.addr %s501, 16
        %s503 = scalar_lea.vmem [#allocation8], %s502
        %s504 = sand.u32 %s190, 1
        %s505 = scalar_lea.sflag [#allocation10], %s504
        %s506 = sand.u32 %s190, 1
        %s507 = smul.addr %s506, 16
        %s508 = scalar_lea.vmem [#allocation9], %s507
        // Predicated region
        $region53: #{tpu_custom_call.1} parent=39 // pred_check
          %p509 = pneg %p172
        $region54: #{tpu_custom_call.1} parent=39 // pred_check_branch
          %511 = sbr.rel (%p509) target = $region56
        $region55: #{tpu_custom_call.1} parent=39 // pred_region
          %s513 = ssub.s32 256, 256
          %514 = vsyncadd %s500, %s513
          %s515 = smul.addr %s32, 4
          %s516 = sadd.s32 %s33, %s515
          %s517 = smul.addr %s516, 64
          %s518 = scalar_lea.hbm %s5, %s517
          %s519 = sshll.u32 %s503, 4
          %s520 = int_to_ptr.vmem [resolvable:$true] %s519
          %525 = dma.vmem_to_hbm [thread:$0]  %s520, 256, %s518, %s500, 64, 64, 4
        $region56: #{tpu_custom_call.1} parent=39 // pred_fallthru
          _
        // Predicated region
        $region57: #{tpu_custom_call.1} parent=39 // pred_check
          %p526 = pneg %p200
        $region58: #{tpu_custom_call.1} parent=39 // pred_check_branch
          %528 = sbr.rel (%p526) target = $region60
        $region59: #{tpu_custom_call.1} parent=39 // pred_region
          %s530 = ssub.s32 256, 256
          %531 = vsyncadd %s505, %s530
          %s532 = smul.addr %s32, 4
          %s533 = sadd.s32 %s33, %s532
          %s534 = smul.addr %s533, 64
          %s535 = scalar_lea.hbm %s6, %s534
          %s536 = sshll.u32 %s508, 4
          %s537 = int_to_ptr.vmem [resolvable:$true] %s536
          %542 = dma.vmem_to_hbm [thread:$0]  %s537, 256, %s535, %s505, 64, 64, 4
        $region60: #{tpu_custom_call.1} parent=39 // pred_fallthru
          _
      $region40: #{tpu_custom_call.1} parent=5 // pred_fallthru
        _
      %p543 = scmp.le.s32.totalorder 2, %s23
      // Predicated region
      $region61: #{tpu_custom_call.1} parent=5 // pred_check
        %p544 = pneg %p543
      $region62: #{tpu_custom_call.1} parent=5 // pred_check_branch
        %546 = sbr.rel (%p544) target = $region64
      $region63: #{tpu_custom_call.1} parent=5 // pred_region
        %s547 = ssub.s32 %s23, 2
        // Predicated region
        $region65: #{tpu_custom_call.1} parent=63 // pred_check
          %p548 = pneg %p178
        $region66: #{tpu_custom_call.1} parent=63 // pred_check_branch
          %550 = sbr.rel (%p548) target = $region68
        $region67: #{tpu_custom_call.1} parent=63 // pred_region
          %s551 = sand.u32 %s163, 1
          %s552 = scalar_lea.sflag [#allocation4], %s551
          %s553 = sand.u32 %s163, 1
          %s554 = smul.addr %s553, 16
          %s555 = scalar_lea.vmem [#allocation8], %s554
          %556 = dma.done %s552, 256
        $region68: #{tpu_custom_call.1} parent=63 // pred_fallthru
          _
        // Predicated region
        $region69: #{tpu_custom_call.1} parent=63 // pred_check
          %p557 = pneg %p206
        $region70: #{tpu_custom_call.1} parent=63 // pred_check_branch
          %559 = sbr.rel (%p557) target = $region72
        $region71: #{tpu_custom_call.1} parent=63 // pred_region
          %s560 = sand.u32 %s191, 1
          %s561 = scalar_lea.sflag [#allocation10], %s560
          %s562 = sand.u32 %s191, 1
          %s563 = smul.addr %s562, 16
          %s564 = scalar_lea.vmem [#allocation9], %s563
          %565 = dma.done %s561, 256
        $region72: #{tpu_custom_call.1} parent=63 // pred_fallthru
          _
      $region64: #{tpu_custom_call.1} parent=5 // pred_fallthru
        _
    $region6: #{tpu_custom_call.1} parent=1 // loop_footer
      %s27 = sadd.s32 1, %s23
    $region7: #{tpu_custom_call.1} parent=1 // loop_footer_branch
      %22 = sbr.rel target = $region3
    $region8: #{tpu_custom_call.1} parent=1 // loop_exit
      _
    %566 = vsyncpa [#allocation3], 1
    %s567 = scalar_lea.sflag [#allocation3], 1
    %568 = vsyncpa %s567, 1
    %569 = vsyncpa [#allocation6], 1
    %570 = vsyncpa [#allocation4], 1
    %s571 = scalar_lea.sflag [#allocation4], 1
    %572 = vsyncpa %s571, 1
    %573 = vsyncpa [#allocation10], 1
    %s574 = scalar_lea.sflag [#allocation10], 1
    %575 = vsyncpa %s574, 1

</llo_original>
